<compile_context>
chip_gen: v7x
topology: tpu7x:2x2x1
jax: 0.10.0
libtpu: 0.0.40
codegen_flags: <defaults>
</compile_context>

<pallas_src>
import functools

import jax
import jax.numpy as jnp
from jax.experimental import pallas as pl
from jax.experimental.pallas import tpu as pltpu


def mlp_ensemble_kernel(x_ref, w1_ref, b1_ref, w2_ref, b2_ref, o_ref):
    # x_ref : (G, B, D_in)   w1_ref: (G, D_in, H)   b1_ref: (G, 1, H)
    # w2_ref: (G, H, D_out)  b2_ref: (G, 1, D_out)  o_ref : (G, B, D_out)
    x = x_ref[...]

    # Hidden layer: h = relu(x @ W1 + b1), f32 accumulation on the MXU.
    h = jnp.einsum("gbd,gdh->gbh", x, w1_ref[...],
                   preferred_element_type=jnp.float32)
    h = jnp.maximum(h + b1_ref[...], 0.0)

    # Output layer: y = h @ W2 + b2.  Cast h to the weight dtype before the
    # second matmul (no-op for f32; enables bf16 MXU feeds on v5e/v6e/v7x).
    y = jnp.einsum("gbh,gho->gbo", h.astype(w2_ref.dtype), w2_ref[...],
                   preferred_element_type=jnp.float32)
    o_ref[...] = (y + b2_ref[...]).astype(o_ref.dtype)


def _min_grid_steps():
    """2 grid steps on 2-TensorCore chips (v7x) so both TCs get work, else 1."""
    try:
        kind = jax.devices()[0].device_kind.lower()
    except Exception:
        kind = ""
    return 2 if ("v7" in kind or "7x" in kind) else 1


def _members_per_step(E, B, D_in, H, D_out, itemsize, min_steps,
                      vmem_budget_bytes=16 * 1024 * 1024):
    """Largest member-group G dividing E (with >= min_steps steps) that fits a
    conservative, generation-agnostic VMEM budget."""
    per_member = itemsize * (B * D_in + D_in * H + H + H * D_out + D_out)
    per_member += 4 * B * D_out          # f32 output block
    per_member *= 2                      # Pallas double-buffers every block
    max_g = max(1, vmem_budget_bytes // max(per_member, 1))
    for steps in range(min_steps, E + 1):
        if E % steps == 0 and E // steps <= max_g:
            return E // steps
    return 1


@functools.partial(jax.jit, static_argnames=("members_per_step",))
def _forward_impl(x, w1, b1, w2, b2, *, members_per_step):
    E, B, D_in = x.shape
    H = w1.shape[2]
    D_out = w2.shape[2]
    G = members_per_step
    grid = (E // G,)

    # Reshape biases for in-kernel broadcasting; free under jit (layout only).
    b1r = b1.reshape(E, 1, H)
    b2r = b2.reshape(E, 1, D_out)

    return pl.pallas_call(
        mlp_ensemble_kernel,
        out_shape=jax.ShapeDtypeStruct((E, B, D_out), jnp.float32),
        grid=grid,
        in_specs=[
            pl.BlockSpec((G, B, D_in), lambda i: (i, 0, 0)),
            pl.BlockSpec((G, D_in, H), lambda i: (i, 0, 0)),
            pl.BlockSpec((G, 1, H), lambda i: (i, 0, 0)),
            pl.BlockSpec((G, H, D_out), lambda i: (i, 0, 0)),
            pl.BlockSpec((G, 1, D_out), lambda i: (i, 0, 0)),
        ],
        out_specs=pl.BlockSpec((G, B, D_out), lambda i: (i, 0, 0)),
        compiler_params=pltpu.CompilerParams(
            # Member groups are independent: with 2 grid steps on v7x this
            # shards one group per TensorCore; harmless when grid=(1,).
            dimension_semantics=("parallel",),
            # Explicit, generation-safe scoped-VMEM limit (<= 64 MiB physical
            # on v7x); the G heuristic above plans against 16 MiB of data.
            vmem_limit_bytes=32 * 1024 * 1024,
        ),
    )(x, w1, b1r, w2, b2r)


def ensemble_mlp_forward(x, w1, b1, w2, b2, *, members_per_step=None):
    """Fused ensemble forward: y[e] = relu(x[e] @ w1[e] + b1[e]) @ w2[e] + b2[e].

    x : (E, B, D_in)
    w1: (E, D_in, H)      (pre-transposed vs PyTorch's (H, D_in))
    b1: (E, H)
    w2: (E, H, D_out)
    b2: (E, D_out)
    Returns (E, B, D_out) in float32.
    """
    E, B, D_in = x.shape
    H = w1.shape[2]
    D_out = w2.shape[2]
    if members_per_step is None:
        members_per_step = _members_per_step(
            E, B, D_in, H, D_out,
            jnp.dtype(w1.dtype).itemsize, _min_grid_steps())
    assert E % members_per_step == 0, "members_per_step must divide E"
    return _forward_impl(x, w1, b1, w2, b2, members_per_step=members_per_step)


if __name__ == "__main__":
    # Module shapes: input_dim == output_dim == state_size, hidden_dim = 80.
    E = 8            # ensemble members
    B = 8            # batch per member
    state_size = 16  # input_dim == output_dim
    hidden = 80

    key = jax.random.PRNGKey(0)
    kx, k1, k2, k3, k4 = jax.random.split(key, 5)
    x = jax.random.normal(kx, (E, B, state_size), jnp.float32)

    # PyTorch nn.Linear default init (uniform +/- 1/sqrt(fan_in)); weights
    # stored pre-transposed as (in_features, out_features).
    bound1 = 1.0 / jnp.sqrt(jnp.float32(state_size))
    bound2 = 1.0 / jnp.sqrt(jnp.float32(hidden))
    w1 = jax.random.uniform(k1, (E, state_size, hidden), jnp.float32, -bound1, bound1)
    b1 = jax.random.uniform(k2, (E, hidden), jnp.float32, -bound1, bound1)
    w2 = jax.random.uniform(k3, (E, hidden, state_size), jnp.float32, -bound2, bound2)
    b2 = jax.random.uniform(k4, (E, state_size), jnp.float32, -bound2, bound2)

    # Auto grid: one step on v5e/v6e (G=8), two parallel steps on v7x (G=4).
    out = ensemble_mlp_forward(x, w1, b1, w2, b2)
    out = jax.block_until_ready(out)

    # Plain-JAX reference (same math as the PyTorch forward, per member).
    h_ref = jnp.maximum(jnp.einsum("ebd,edh->ebh", x, w1) + b1[:, None, :], 0.0)
    ref = jnp.einsum("ebh,eho->ebo", h_ref, w2) + b2[:, None, :]

    assert out.shape == (E, B, state_size)
    assert jnp.allclose(out, ref, atol=1e-5, rtol=1e-5)
    print("KERNEL_OK")
</pallas_src>

<mosaic_0001>
module attributes {stable_mosaic.version = 11 : i64} {
  func.func @mlp_ensemble_kernel(%arg0: i32, %arg1: memref<8x8x16xf32, #tpu.memory_space<vmem>>, %arg2: memref<8x16x80xf32, #tpu.memory_space<vmem>>, %arg3: memref<8x1x80xf32, #tpu.memory_space<vmem>>, %arg4: memref<8x80x16xf32, #tpu.memory_space<vmem>>, %arg5: memref<8x1x16xf32, #tpu.memory_space<vmem>>, %arg6: memref<8x8x16xf32, #tpu.memory_space<vmem>>) attributes {dimension_semantics = [#tpu.dimension_semantics<parallel>], iteration_bounds = array<i64: 1>, scalar_prefetch = 0 : i64, scratch_operands = 0 : i64, tpu.core_type = #tpu.core_type<tc>, window_params = [{transform_indices = @transform_0, window_bounds = array<i64: 8, 8, 16>}, {transform_indices = @transform_1, window_bounds = array<i64: 8, 16, 80>}, {transform_indices = @transform_2, window_bounds = array<i64: 8, 1, 80>}, {transform_indices = @transform_3, window_bounds = array<i64: 8, 80, 16>}, {transform_indices = @transform_4, window_bounds = array<i64: 8, 1, 16>}, {transform_indices = @transform_5, window_bounds = array<i64: 8, 8, 16>}]} {
    %c0 = arith.constant 0 : index
    %c0_0 = arith.constant 0 : index
    %c0_1 = arith.constant 0 : index
    %0 = vector.load %arg1[%c0, %c0_0, %c0_1] : memref<8x8x16xf32, #tpu.memory_space<vmem>>, vector<8x8x16xf32>
    %c0_2 = arith.constant 0 : index
    %c0_3 = arith.constant 0 : index
    %c0_4 = arith.constant 0 : index
    %1 = vector.load %arg2[%c0_2, %c0_3, %c0_4] : memref<8x16x80xf32, #tpu.memory_space<vmem>>, vector<8x16x80xf32>
    "tpu.trace_start"() <{level = 10 : i32, message = "gbd,gdh->gbh"}> : () -> ()
    %cst = arith.constant dense<0.000000e+00> : vector<8x8x80xf32>
    %2 = tpu.matmul %0, %1, %cst {dimension_numbers = #tpu.dot_dimension_numbers<[2], [1], [1], [2], [0, 0, 0, 1, 1, 2], [0], [0]>} : vector<8x8x16xf32>, vector<8x16x80xf32>, vector<8x8x80xf32> -> vector<8x8x80xf32>
    "tpu.trace_stop"() : () -> ()
    %c0_5 = arith.constant 0 : index
    %c0_6 = arith.constant 0 : index
    %c0_7 = arith.constant 0 : index
    %3 = vector.load %arg3[%c0_5, %c0_6, %c0_7] : memref<8x1x80xf32, #tpu.memory_space<vmem>>, vector<8x1x80xf32>
    %4 = vector.broadcast %3 : vector<8x1x80xf32> to vector<8x8x80xf32>
    %5 = arith.addf %2, %4 : vector<8x8x80xf32>
    %cst_8 = arith.constant 0.000000e+00 : f32
    %6 = vector.broadcast %cst_8 : f32 to vector<8x8x80xf32>
    %7 = arith.maximumf %5, %6 : vector<8x8x80xf32>
    %c0_9 = arith.constant 0 : index
    %c0_10 = arith.constant 0 : index
    %c0_11 = arith.constant 0 : index
    %8 = vector.load %arg4[%c0_9, %c0_10, %c0_11] : memref<8x80x16xf32, #tpu.memory_space<vmem>>, vector<8x80x16xf32>
    "tpu.trace_start"() <{level = 10 : i32, message = "gbh,gho->gbo"}> : () -> ()
    %cst_12 = arith.constant dense<0.000000e+00> : vector<8x8x16xf32>
    %9 = tpu.matmul %7, %8, %cst_12 {dimension_numbers = #tpu.dot_dimension_numbers<[2], [1], [1], [2], [0, 0, 0, 1, 1, 2], [0], [0]>} : vector<8x8x80xf32>, vector<8x80x16xf32>, vector<8x8x16xf32> -> vector<8x8x16xf32>
    "tpu.trace_stop"() : () -> ()
    %c0_13 = arith.constant 0 : index
    %c0_14 = arith.constant 0 : index
    %c0_15 = arith.constant 0 : index
    %10 = vector.load %arg5[%c0_13, %c0_14, %c0_15] : memref<8x1x16xf32, #tpu.memory_space<vmem>>, vector<8x1x16xf32>
    %11 = vector.broadcast %10 : vector<8x1x16xf32> to vector<8x8x16xf32>
    %12 = arith.addf %9, %11 : vector<8x8x16xf32>
    %c0_16 = arith.constant 0 : index
    %c0_17 = arith.constant 0 : index
    %c0_18 = arith.constant 0 : index
    %13 = vector.load %arg6[%c0_16, %c0_17, %c0_18] : memref<8x8x16xf32, #tpu.memory_space<vmem>>, vector<8x8x16xf32>
    tpu.vector_store %arg6[%c0_16, %c0_17, %c0_18], %12 {strides = array<i32>} : memref<8x8x16xf32, #tpu.memory_space<vmem>>, vector<8x8x16xf32>,
    return
  }
  func.func @transform_0(%arg0: i32) -> (i32, i32, i32) {
    %c0_i32 = arith.constant 0 : i32
    %c0_i32_0 = arith.constant 0 : i32
    %c0_i32_1 = arith.constant 0 : i32
    return %arg0, %c0_i32, %c0_i32_0 : i32, i32, i32
  }
  func.func @transform_1(%arg0: i32) -> (i32, i32, i32) {
    %c0_i32 = arith.constant 0 : i32
    %c0_i32_0 = arith.constant 0 : i32
    %c0_i32_1 = arith.constant 0 : i32
    return %arg0, %c0_i32, %c0_i32_0 : i32, i32, i32
  }
  func.func @transform_2(%arg0: i32) -> (i32, i32, i32) {
    %c0_i32 = arith.constant 0 : i32
    %c0_i32_0 = arith.constant 0 : i32
    %c0_i32_1 = arith.constant 0 : i32
    return %arg0, %c0_i32, %c0_i32_0 : i32, i32, i32
  }
  func.func @transform_3(%arg0: i32) -> (i32, i32, i32) {
    %c0_i32 = arith.constant 0 : i32
    %c0_i32_0 = arith.constant 0 : i32
    %c0_i32_1 = arith.constant 0 : i32
    return %arg0, %c0_i32, %c0_i32_0 : i32, i32, i32
  }
  func.func @transform_4(%arg0: i32) -> (i32, i32, i32) {
    %c0_i32 = arith.constant 0 : i32
    %c0_i32_0 = arith.constant 0 : i32
    %c0_i32_1 = arith.constant 0 : i32
    return %arg0, %c0_i32, %c0_i32_0 : i32, i32, i32
  }
  func.func @transform_5(%arg0: i32) -> (i32, i32, i32) {
    %c0_i32 = arith.constant 0 : i32
    %c0_i32_0 = arith.constant 0 : i32
    %c0_i32_1 = arith.constant 0 : i32
    return %arg0, %c0_i32, %c0_i32_0 : i32, i32, i32
  }
}

</mosaic_0001>

<llo_original>
// kernel: _forward_impl.1
$region0: #{_forward_impl.1}
  #allocation0 [shape = 'u32[]', space=smem, size = 0x4, offset = 0x4, fixed_abs, tag = 'smem constant byte address 0x4 - core index']
  #allocation1 [shape = 'u32[144,128]{1,0:T(1,128)}', space=vmem, size = 0x12000, scoped, tag = 'internal scratch']
  %s0 = inlined_call_operand.vmem [shape: f32[8,8,16], index: 0, kind: input, shape index: {}]
  %s1 = inlined_call_operand.vmem [shape: f32[8,16,80], index: 1, kind: input, shape index: {}]
  %s2 = inlined_call_operand.vmem [shape: f32[8,1,80], index: 2, kind: input, shape index: {}]
  %s3 = inlined_call_operand.vmem [shape: f32[8,80,16], index: 3, kind: input, shape index: {}]
  %s4 = inlined_call_operand.vmem [shape: f32[8,1,16], index: 4, kind: input, shape index: {}]
  %s5 = inlined_call_operand.hbm [shape: f32[8,8,16], index: 5, kind: output, shape index: {}]
  %s6 = sld [smem:[#allocation0]]
  $region30: #{_forward_impl.1} parent=0
    _
  %s8 = ssub.s32 1, %s6
  %s9 = scalar_select 0, %s8, %s6
  $region1: #{_forward_impl.1} parent=0
    #allocation2 [shape = 'u8[32768]{0}', space=vmem, size = 0x8000, scoped, tag = 'output window, operand 0, single buffered']
    #allocation3 [shape = 's32[1]{0}', space=sflag, size = 0x4, scoped, tag = 'scoped memory for _forward_impl.1']
    %10 = vsyncpa [#allocation3], 0
    // Predicated region
    $region2: #{_forward_impl.1} parent=1 // pred_check
      _
    $region3: #{_forward_impl.1} parent=1 // pred_check_branch
      %12 = sbr.rel (0) target = $region5
    $region4: #{_forward_impl.1} parent=1 // pred_region
      _
    $region5: #{_forward_impl.1} parent=1 // pred_fallthru
      _
    // Predicated region
    $region6: #{_forward_impl.1} parent=1 // pred_check
      _
    $region7: #{_forward_impl.1} parent=1 // pred_check_branch
      %14 = sbr.rel (0) target = $region9
    $region8: #{_forward_impl.1} parent=1 // pred_region
      _
    $region9: #{_forward_impl.1} parent=1 // pred_fallthru
      _
    // Predicated region
    $region10: #{_forward_impl.1} parent=1 // pred_check
      _
    $region11: #{_forward_impl.1} parent=1 // pred_check_branch
      %16 = sbr.rel (0) target = $region13
    $region12: #{_forward_impl.1} parent=1 // pred_region
      _
    $region13: #{_forward_impl.1} parent=1 // pred_fallthru
      _
    // Predicated region
    $region14: #{_forward_impl.1} parent=1 // pred_check
      _
    $region15: #{_forward_impl.1} parent=1 // pred_check_branch
      %18 = sbr.rel (0) target = $region17
    $region16: #{_forward_impl.1} parent=1 // pred_region
      _
    $region17: #{_forward_impl.1} parent=1 // pred_fallthru
      _
    // Predicated region
    $region18: #{_forward_impl.1} parent=1 // pred_check
      _
    $region19: #{_forward_impl.1} parent=1 // pred_check_branch
      %20 = sbr.rel (0) target = $region21
    $region20: #{_forward_impl.1} parent=1 // pred_region
      _
    $region21: #{_forward_impl.1} parent=1 // pred_fallthru
      _
    %v21 = vld [vmem:[%s0] sm:$0xff]
    %v22 = vld [vmem:[%s0 + $0x8] sm:$0xff]
    %v23 = vld [vmem:[%s0 + $0x10] sm:$0xff]
    %v24 = vld [vmem:[%s0 + $0x18] sm:$0xff]
    %v25 = vld [vmem:[%s0 + $0x20] sm:$0xff]
    %v26 = vld [vmem:[%s0 + $0x28] sm:$0xff]
    %v27 = vld [vmem:[%s0 + $0x30] sm:$0xff]
    %v28 = vld [vmem:[%s0 + $0x38] sm:$0xff]
    %v29 = vld [vmem:[%s1] sm:$0xff]
    %v30 = vld [vmem:[%s1 + $0x8] sm:$0xff]
    %v31 = vld [vmem:[%s1 + $0x10] sm:$0xff]
    %v32 = vld [vmem:[%s1 + $0x18] sm:$0xff]
    %v33 = vld [vmem:[%s1 + $0x20] sm:$0xff]
    %v34 = vld [vmem:[%s1 + $0x28] sm:$0xff]
    %v35 = vld [vmem:[%s1 + $0x30] sm:$0xff]
    %v36 = vld [vmem:[%s1 + $0x38] sm:$0xff]
    %v37 = vld [vmem:[%s1 + $0x40] sm:$0xff]
    %v38 = vld [vmem:[%s1 + $0x48] sm:$0xff]
    %v39 = vld [vmem:[%s1 + $0x50] sm:$0xff]
    %v40 = vld [vmem:[%s1 + $0x58] sm:$0xff]
    %v41 = vld [vmem:[%s1 + $0x60] sm:$0xff]
    %v42 = vld [vmem:[%s1 + $0x68] sm:$0xff]
    %v43 = vld [vmem:[%s1 + $0x70] sm:$0xff]
    %v44 = vld [vmem:[%s1 + $0x78] sm:$0xff]
    %v45 = vld [vmem:[%s2] sm:$0x1]
    %v46 = vld [vmem:[%s2 + $0x1] sm:$0x1]
    %v47 = vld [vmem:[%s2 + $0x2] sm:$0x1]
    %v48 = vld [vmem:[%s2 + $0x3] sm:$0x1]
    %v49 = vld [vmem:[%s2 + $0x4] sm:$0x1]
    %v50 = vld [vmem:[%s2 + $0x5] sm:$0x1]
    %v51 = vld [vmem:[%s2 + $0x6] sm:$0x1]
    %v52 = vld [vmem:[%s2 + $0x7] sm:$0x1]
    %v61 = vlaneseq
    %v62 = vshrl.u32 %v61, 7
    %v63 = vsub.s32 0, %v62
    %v64 = vrot.slane %v45, %v63
    %v65 = vlaneseq
    %v66 = vshrl.u32 %v65, 7
    %v67 = vsub.s32 0, %v66
    %v68 = vrot.slane %v46, %v67
    %v69 = vlaneseq
    %v70 = vshrl.u32 %v69, 7
    %v71 = vsub.s32 0, %v70
    %v72 = vrot.slane %v47, %v71
    %v73 = vlaneseq
    %v74 = vshrl.u32 %v73, 7
    %v75 = vsub.s32 0, %v74
    %v76 = vrot.slane %v48, %v75
    %v77 = vlaneseq
    %v78 = vshrl.u32 %v77, 7
    %v79 = vsub.s32 0, %v78
    %v80 = vrot.slane %v49, %v79
    %v81 = vlaneseq
    %v82 = vshrl.u32 %v81, 7
    %v83 = vsub.s32 0, %v82
    %v84 = vrot.slane %v50, %v83
    %v85 = vlaneseq
    %v86 = vshrl.u32 %v85, 7
    %v87 = vsub.s32 0, %v86
    %v88 = vrot.slane %v51, %v87
    %v89 = vlaneseq
    %v90 = vshrl.u32 %v89, 7
    %v91 = vsub.s32 0, %v90
    %v92 = vrot.slane %v52, %v91
    %vm101 = vcmask 130048
    %v103 = vsel %vm101, %v21, 0
    %105 = vmatprep.subr.mxu0 0.0
    %106 = vmatpush1.msra.mxu0 %v29
    %107 = vmatprep.subr.mxu0 0.0
    %108 = vmatpush1.msra.mxu0 %v30
    %109 = vmatprep.subr.mxu0 0.0
    %110 = vmatpush1.msra.mxu0 0.0
    %111 = vmatprep.subr.mxu0 0.0
    %112 = vmatpush1.msra.mxu0 0.0
    %113 = vmatprep.subr.mxu0 0.0
    %114 = vmatpush1.msra.mxu0 0.0
    %115 = vmatprep.subr.mxu0 0.0
    %116 = vmatpush1.msra.mxu0 0.0
    %117 = vmatprep.subr.mxu0 0.0
    %118 = vmatpush1.msra.mxu0 0.0
    %119 = vmatprep.subr.mxu0 0.0
    %120 = vmatpush1.msra.mxu0 0.0
    %121 = vmatprep.subr.mxu0 0.0
    %122 = vmatpush1.msra.mxu0 0.0
    %123 = vmatprep.subr.mxu0 0.0
    %124 = vmatpush1.msra.mxu0 0.0
    %125 = vmatprep.subr.mxu0 0.0
    %126 = vmatpush1.msra.mxu0 0.0
    %127 = vmatprep.subr.mxu0 0.0
    %128 = vmatpush1.msra.mxu0 0.0
    %129 = vmatprep.subr.mxu0 0.0
    %130 = vmatpush1.msra.mxu0 0.0
    %131 = vmatprep.subr.mxu0 0.0
    %132 = vmatpush1.msra.mxu0 0.0
    %133 = vmatprep.subr.mxu0 0.0
    %134 = vmatpush1.msra.mxu0 0.0
    %135 = vmatprep.subr.mxu0 0.0
    %136 = vmatpush1.msra.mxu0 0.0
    %137 = vmatprep.subr.mxu0 0.0
    %138 = vmatpush1.msra.mxu0 0.0
    %139 = vmatprep.subr.mxu0 0.0
    %140 = vmatpush1.msra.mxu0 0.0
    %141 = vmatprep.subr.mxu0 0.0
    %142 = vmatpush1.msra.mxu0 0.0
    %143 = vmatprep.subr.mxu0 0.0
    %144 = vmatpush1.msra.mxu0 0.0
    %145 = vmatprep.subr.mxu0 0.0
    %146 = vmatpush1.msra.mxu0 0.0
    %147 = vmatprep.subr.mxu0 0.0
    %148 = vmatpush1.msra.mxu0 0.0
    %149 = vmatprep.subr.mxu0 0.0
    %150 = vmatpush1.msra.mxu0 0.0
    %151 = vmatprep.subr.mxu0 0.0
    %152 = vmatpush1.msra.mxu0 0.0
    %153 = vmatprep.subr.mxu0 0.0
    %154 = vmatpush1.msra.mxu0 0.0
    %155 = vmatprep.subr.mxu0 0.0
    %156 = vmatpush1.msra.mxu0 0.0
    %157 = vmatprep.subr.mxu0 0.0
    %158 = vmatpush1.msra.mxu0 0.0
    %159 = vmatprep.subr.mxu0 0.0
    %160 = vmatpush1.msra.mxu0 0.0
    %161 = vmatprep.subr.mxu0 0.0
    %162 = vmatpush1.msra.mxu0 0.0
    %163 = vmatprep.subr.mxu0 0.0
    %164 = vmatpush1.msra.mxu0 0.0
    %165 = vmatprep.subr.mxu0 0.0
    %166 = vmatpush1.msra.mxu0 0.0
    %167 = vmatprep.subr.mxu0 0.0
    %168 = vmatpush1.msra.mxu0 0.0
    %169 = vmatprep.mubr.f32.mxu0 0.0
    %170 = vmatmul.mubr.f32.gmra.mrb[0].mxu0 %v103
    %v171 = vpop.f32.mrb[0].mxu0
    %v172 = vadd.f32 %v64, %v171
    %v173 = vpop.f32.mrb[0].mxu0
    %174 = vdwg.mxu0
    %v176 = vsel %vm101, %v22, 0
    %178 = vmatprep.subr.mxu0 0.0
    %179 = vmatpush1.msra.mxu0 %v31
    %180 = vmatprep.subr.mxu0 0.0
    %181 = vmatpush1.msra.mxu0 %v32
    %182 = vmatprep.subr.mxu0 0.0
    %183 = vmatpush1.msra.mxu0 0.0
    %184 = vmatprep.subr.mxu0 0.0
    %185 = vmatpush1.msra.mxu0 0.0
    %186 = vmatprep.subr.mxu0 0.0
    %187 = vmatpush1.msra.mxu0 0.0
    %188 = vmatprep.subr.mxu0 0.0
    %189 = vmatpush1.msra.mxu0 0.0
    %190 = vmatprep.subr.mxu0 0.0
    %191 = vmatpush1.msra.mxu0 0.0
    %192 = vmatprep.subr.mxu0 0.0
    %193 = vmatpush1.msra.mxu0 0.0
    %194 = vmatprep.subr.mxu0 0.0
    %195 = vmatpush1.msra.mxu0 0.0
    %196 = vmatprep.subr.mxu0 0.0
    %197 = vmatpush1.msra.mxu0 0.0
    %198 = vmatprep.subr.mxu0 0.0
    %199 = vmatpush1.msra.mxu0 0.0
    %200 = vmatprep.subr.mxu0 0.0
    %201 = vmatpush1.msra.mxu0 0.0
    %202 = vmatprep.subr.mxu0 0.0
    %203 = vmatpush1.msra.mxu0 0.0
    %204 = vmatprep.subr.mxu0 0.0
    %205 = vmatpush1.msra.mxu0 0.0
    %206 = vmatprep.subr.mxu0 0.0
    %207 = vmatpush1.msra.mxu0 0.0
    %208 = vmatprep.subr.mxu0 0.0
    %209 = vmatpush1.msra.mxu0 0.0
    %210 = vmatprep.subr.mxu0 0.0
    %211 = vmatpush1.msra.mxu0 0.0
    %212 = vmatprep.subr.mxu0 0.0
    %213 = vmatpush1.msra.mxu0 0.0
    %214 = vmatprep.subr.mxu0 0.0
    %215 = vmatpush1.msra.mxu0 0.0
    %216 = vmatprep.subr.mxu0 0.0
    %217 = vmatpush1.msra.mxu0 0.0
    %218 = vmatprep.subr.mxu0 0.0
    %219 = vmatpush1.msra.mxu0 0.0
    %220 = vmatprep.subr.mxu0 0.0
    %221 = vmatpush1.msra.mxu0 0.0
    %222 = vmatprep.subr.mxu0 0.0
    %223 = vmatpush1.msra.mxu0 0.0
    %224 = vmatprep.subr.mxu0 0.0
    %225 = vmatpush1.msra.mxu0 0.0
    %226 = vmatprep.subr.mxu0 0.0
    %227 = vmatpush1.msra.mxu0 0.0
    %228 = vmatprep.subr.mxu0 0.0
    %229 = vmatpush1.msra.mxu0 0.0
    %230 = vmatprep.subr.mxu0 0.0
    %231 = vmatpush1.msra.mxu0 0.0
    %232 = vmatprep.subr.mxu0 0.0
    %233 = vmatpush1.msra.mxu0 0.0
    %234 = vmatprep.subr.mxu0 0.0
    %235 = vmatpush1.msra.mxu0 0.0
    %236 = vmatprep.subr.mxu0 0.0
    %237 = vmatpush1.msra.mxu0 0.0
    %238 = vmatprep.subr.mxu0 0.0
    %239 = vmatpush1.msra.mxu0 0.0
    %240 = vmatprep.subr.mxu0 0.0
    %241 = vmatpush1.msra.mxu0 0.0
    %242 = vmatprep.mubr.f32.mxu0 0.0
    %243 = vmatmul.mubr.f32.gmra.mrb[0].mxu0 %v176
    %v244 = vpop.f32.mrb[0].mxu0
    %v245 = vadd.f32 %v68, %v244
    %v246 = vpop.f32.mrb[0].mxu0
    %247 = vdwg.mxu0
    %v249 = vsel %vm101, %v23, 0
    %251 = vmatprep.subr.mxu0 0.0
    %252 = vmatpush1.msra.mxu0 %v33
    %253 = vmatprep.subr.mxu0 0.0
    %254 = vmatpush1.msra.mxu0 %v34
    %255 = vmatprep.subr.mxu0 0.0
    %256 = vmatpush1.msra.mxu0 0.0
    %257 = vmatprep.subr.mxu0 0.0
    %258 = vmatpush1.msra.mxu0 0.0
    %259 = vmatprep.subr.mxu0 0.0
    %260 = vmatpush1.msra.mxu0 0.0
    %261 = vmatprep.subr.mxu0 0.0
    %262 = vmatpush1.msra.mxu0 0.0
    %263 = vmatprep.subr.mxu0 0.0
    %264 = vmatpush1.msra.mxu0 0.0
    %265 = vmatprep.subr.mxu0 0.0
    %266 = vmatpush1.msra.mxu0 0.0
    %267 = vmatprep.subr.mxu0 0.0
    %268 = vmatpush1.msra.mxu0 0.0
    %269 = vmatprep.subr.mxu0 0.0
    %270 = vmatpush1.msra.mxu0 0.0
    %271 = vmatprep.subr.mxu0 0.0
    %272 = vmatpush1.msra.mxu0 0.0
    %273 = vmatprep.subr.mxu0 0.0
    %274 = vmatpush1.msra.mxu0 0.0
    %275 = vmatprep.subr.mxu0 0.0
    %276 = vmatpush1.msra.mxu0 0.0
    %277 = vmatprep.subr.mxu0 0.0
    %278 = vmatpush1.msra.mxu0 0.0
    %279 = vmatprep.subr.mxu0 0.0
    %280 = vmatpush1.msra.mxu0 0.0
    %281 = vmatprep.subr.mxu0 0.0
    %282 = vmatpush1.msra.mxu0 0.0
    %283 = vmatprep.subr.mxu0 0.0
    %284 = vmatpush1.msra.mxu0 0.0
    %285 = vmatprep.subr.mxu0 0.0
    %286 = vmatpush1.msra.mxu0 0.0
    %287 = vmatprep.subr.mxu0 0.0
    %288 = vmatpush1.msra.mxu0 0.0
    %289 = vmatprep.subr.mxu0 0.0
    %290 = vmatpush1.msra.mxu0 0.0
    %291 = vmatprep.subr.mxu0 0.0
    %292 = vmatpush1.msra.mxu0 0.0
    %293 = vmatprep.subr.mxu0 0.0
    %294 = vmatpush1.msra.mxu0 0.0
    %295 = vmatprep.subr.mxu0 0.0
    %296 = vmatpush1.msra.mxu0 0.0
    %297 = vmatprep.subr.mxu0 0.0
    %298 = vmatpush1.msra.mxu0 0.0
    %299 = vmatprep.subr.mxu0 0.0
    %300 = vmatpush1.msra.mxu0 0.0
    %301 = vmatprep.subr.mxu0 0.0
    %302 = vmatpush1.msra.mxu0 0.0
    %303 = vmatprep.subr.mxu0 0.0
    %304 = vmatpush1.msra.mxu0 0.0
    %305 = vmatprep.subr.mxu0 0.0
    %306 = vmatpush1.msra.mxu0 0.0
    %307 = vmatprep.subr.mxu0 0.0
    %308 = vmatpush1.msra.mxu0 0.0
    %309 = vmatprep.subr.mxu0 0.0
    %310 = vmatpush1.msra.mxu0 0.0
    %311 = vmatprep.subr.mxu0 0.0
    %312 = vmatpush1.msra.mxu0 0.0
    %313 = vmatprep.subr.mxu0 0.0
    %314 = vmatpush1.msra.mxu0 0.0
    %315 = vmatprep.mubr.f32.mxu0 0.0
    %316 = vmatmul.mubr.f32.gmra.mrb[0].mxu0 %v249
    %v317 = vpop.f32.mrb[0].mxu0
    %v318 = vadd.f32 %v72, %v317
    %v319 = vpop.f32.mrb[0].mxu0
    %320 = vdwg.mxu0
    %v322 = vsel %vm101, %v24, 0
    %324 = vmatprep.subr.mxu0 0.0
    %325 = vmatpush1.msra.mxu0 %v35
    %326 = vmatprep.subr.mxu0 0.0
    %327 = vmatpush1.msra.mxu0 %v36
    %328 = vmatprep.subr.mxu0 0.0
    %329 = vmatpush1.msra.mxu0 0.0
    %330 = vmatprep.subr.mxu0 0.0
    %331 = vmatpush1.msra.mxu0 0.0
    %332 = vmatprep.subr.mxu0 0.0
    %333 = vmatpush1.msra.mxu0 0.0
    %334 = vmatprep.subr.mxu0 0.0
    %335 = vmatpush1.msra.mxu0 0.0
    %336 = vmatprep.subr.mxu0 0.0
    %337 = vmatpush1.msra.mxu0 0.0
    %338 = vmatprep.subr.mxu0 0.0
    %339 = vmatpush1.msra.mxu0 0.0
    %340 = vmatprep.subr.mxu0 0.0
    %341 = vmatpush1.msra.mxu0 0.0
    %342 = vmatprep.subr.mxu0 0.0
    %343 = vmatpush1.msra.mxu0 0.0
    %344 = vmatprep.subr.mxu0 0.0
    %345 = vmatpush1.msra.mxu0 0.0
    %346 = vmatprep.subr.mxu0 0.0
    %347 = vmatpush1.msra.mxu0 0.0
    %348 = vmatprep.subr.mxu0 0.0
    %349 = vmatpush1.msra.mxu0 0.0
    %350 = vmatprep.subr.mxu0 0.0
    %351 = vmatpush1.msra.mxu0 0.0
    %352 = vmatprep.subr.mxu0 0.0
    %353 = vmatpush1.msra.mxu0 0.0
    %354 = vmatprep.subr.mxu0 0.0
    %355 = vmatpush1.msra.mxu0 0.0
    %356 = vmatprep.subr.mxu0 0.0
    %357 = vmatpush1.msra.mxu0 0.0
    %358 = vmatprep.subr.mxu0 0.0
    %359 = vmatpush1.msra.mxu0 0.0
    %360 = vmatprep.subr.mxu0 0.0
    %361 = vmatpush1.msra.mxu0 0.0
    %362 = vmatprep.subr.mxu0 0.0
    %363 = vmatpush1.msra.mxu0 0.0
    %364 = vmatprep.subr.mxu0 0.0
    %365 = vmatpush1.msra.mxu0 0.0
    %366 = vmatprep.subr.mxu0 0.0
    %367 = vmatpush1.msra.mxu0 0.0
    %368 = vmatprep.subr.mxu0 0.0
    %369 = vmatpush1.msra.mxu0 0.0
    %370 = vmatprep.subr.mxu0 0.0
    %371 = vmatpush1.msra.mxu0 0.0
    %372 = vmatprep.subr.mxu0 0.0
    %373 = vmatpush1.msra.mxu0 0.0
    %374 = vmatprep.subr.mxu0 0.0
    %375 = vmatpush1.msra.mxu0 0.0
    %376 = vmatprep.subr.mxu0 0.0
    %377 = vmatpush1.msra.mxu0 0.0
    %378 = vmatprep.subr.mxu0 0.0
    %379 = vmatpush1.msra.mxu0 0.0
    %380 = vmatprep.subr.mxu0 0.0
    %381 = vmatpush1.msra.mxu0 0.0
    %382 = vmatprep.subr.mxu0 0.0
    %383 = vmatpush1.msra.mxu0 0.0
    %384 = vmatprep.subr.mxu0 0.0
    %385 = vmatpush1.msra.mxu0 0.0
    %386 = vmatprep.subr.mxu0 0.0
    %387 = vmatpush1.msra.mxu0 0.0
    %388 = vmatprep.mubr.f32.mxu0 0.0
    %389 = vmatmul.mubr.f32.gmra.mrb[0].mxu0 %v322
    %v390 = vpop.f32.mrb[0].mxu0
    %v391 = vadd.f32 %v76, %v390
    %v392 = vpop.f32.mrb[0].mxu0
    %393 = vdwg.mxu0
    %v395 = vsel %vm101, %v25, 0
    %397 = vmatprep.subr.mxu0 0.0
    %398 = vmatpush1.msra.mxu0 %v37
    %399 = vmatprep.subr.mxu0 0.0
    %400 = vmatpush1.msra.mxu0 %v38
    %401 = vmatprep.subr.mxu0 0.0
    %402 = vmatpush1.msra.mxu0 0.0
    %403 = vmatprep.subr.mxu0 0.0
    %404 = vmatpush1.msra.mxu0 0.0
    %405 = vmatprep.subr.mxu0 0.0
    %406 = vmatpush1.msra.mxu0 0.0
    %407 = vmatprep.subr.mxu0 0.0
    %408 = vmatpush1.msra.mxu0 0.0
    %409 = vmatprep.subr.mxu0 0.0
    %410 = vmatpush1.msra.mxu0 0.0
    %411 = vmatprep.subr.mxu0 0.0
    %412 = vmatpush1.msra.mxu0 0.0
    %413 = vmatprep.subr.mxu0 0.0
    %414 = vmatpush1.msra.mxu0 0.0
    %415 = vmatprep.subr.mxu0 0.0
    %416 = vmatpush1.msra.mxu0 0.0
    %417 = vmatprep.subr.mxu0 0.0
    %418 = vmatpush1.msra.mxu0 0.0
    %419 = vmatprep.subr.mxu0 0.0
    %420 = vmatpush1.msra.mxu0 0.0
    %421 = vmatprep.subr.mxu0 0.0
    %422 = vmatpush1.msra.mxu0 0.0
    %423 = vmatprep.subr.mxu0 0.0
    %424 = vmatpush1.msra.mxu0 0.0
    %425 = vmatprep.subr.mxu0 0.0
    %426 = vmatpush1.msra.mxu0 0.0
    %427 = vmatprep.subr.mxu0 0.0
    %428 = vmatpush1.msra.mxu0 0.0
    %429 = vmatprep.subr.mxu0 0.0
    %430 = vmatpush1.msra.mxu0 0.0
    %431 = vmatprep.subr.mxu0 0.0
    %432 = vmatpush1.msra.mxu0 0.0
    %433 = vmatprep.subr.mxu0 0.0
    %434 = vmatpush1.msra.mxu0 0.0
    %435 = vmatprep.subr.mxu0 0.0
    %436 = vmatpush1.msra.mxu0 0.0
    %437 = vmatprep.subr.mxu0 0.0
    %438 = vmatpush1.msra.mxu0 0.0
    %439 = vmatprep.subr.mxu0 0.0
    %440 = vmatpush1.msra.mxu0 0.0
    %441 = vmatprep.subr.mxu0 0.0
    %442 = vmatpush1.msra.mxu0 0.0
    %443 = vmatprep.subr.mxu0 0.0
    %444 = vmatpush1.msra.mxu0 0.0
    %445 = vmatprep.subr.mxu0 0.0
    %446 = vmatpush1.msra.mxu0 0.0
    %447 = vmatprep.subr.mxu0 0.0
    %448 = vmatpush1.msra.mxu0 0.0
    %449 = vmatprep.subr.mxu0 0.0
    %450 = vmatpush1.msra.mxu0 0.0
    %451 = vmatprep.subr.mxu0 0.0
    %452 = vmatpush1.msra.mxu0 0.0
    %453 = vmatprep.subr.mxu0 0.0
    %454 = vmatpush1.msra.mxu0 0.0
    %455 = vmatprep.subr.mxu0 0.0
    %456 = vmatpush1.msra.mxu0 0.0
    %457 = vmatprep.subr.mxu0 0.0
    %458 = vmatpush1.msra.mxu0 0.0
    %459 = vmatprep.subr.mxu0 0.0
    %460 = vmatpush1.msra.mxu0 0.0
    %461 = vmatprep.mubr.f32.mxu0 0.0
    %462 = vmatmul.mubr.f32.gmra.mrb[0].mxu0 %v395
    %v463 = vpop.f32.mrb[0].mxu0
    %v464 = vadd.f32 %v80, %v463
    %v465 = vpop.f32.mrb[0].mxu0
    %466 = vdwg.mxu0
    %v468 = vsel %vm101, %v26, 0
    %470 = vmatprep.subr.mxu0 0.0
    %471 = vmatpush1.msra.mxu0 %v39
    %472 = vmatprep.subr.mxu0 0.0
    %473 = vmatpush1.msra.mxu0 %v40
    %474 = vmatprep.subr.mxu0 0.0
    %475 = vmatpush1.msra.mxu0 0.0
    %476 = vmatprep.subr.mxu0 0.0
    %477 = vmatpush1.msra.mxu0 0.0
    %478 = vmatprep.subr.mxu0 0.0
    %479 = vmatpush1.msra.mxu0 0.0
    %480 = vmatprep.subr.mxu0 0.0
    %481 = vmatpush1.msra.mxu0 0.0
    %482 = vmatprep.subr.mxu0 0.0
    %483 = vmatpush1.msra.mxu0 0.0
    %484 = vmatprep.subr.mxu0 0.0
    %485 = vmatpush1.msra.mxu0 0.0
    %486 = vmatprep.subr.mxu0 0.0
    %487 = vmatpush1.msra.mxu0 0.0
    %488 = vmatprep.subr.mxu0 0.0
    %489 = vmatpush1.msra.mxu0 0.0
    %490 = vmatprep.subr.mxu0 0.0
    %491 = vmatpush1.msra.mxu0 0.0
    %492 = vmatprep.subr.mxu0 0.0
    %493 = vmatpush1.msra.mxu0 0.0
    %494 = vmatprep.subr.mxu0 0.0
    %495 = vmatpush1.msra.mxu0 0.0
    %496 = vmatprep.subr.mxu0 0.0
    %497 = vmatpush1.msra.mxu0 0.0
    %498 = vmatprep.subr.mxu0 0.0
    %499 = vmatpush1.msra.mxu0 0.0
    %500 = vmatprep.subr.mxu0 0.0
    %501 = vmatpush1.msra.mxu0 0.0
    %502 = vmatprep.subr.mxu0 0.0
    %503 = vmatpush1.msra.mxu0 0.0
    %504 = vmatprep.subr.mxu0 0.0
    %505 = vmatpush1.msra.mxu0 0.0
    %506 = vmatprep.subr.mxu0 0.0
    %507 = vmatpush1.msra.mxu0 0.0
    %508 = vmatprep.subr.mxu0 0.0
    %509 = vmatpush1.msra.mxu0 0.0
    %510 = vmatprep.subr.mxu0 0.0
    %511 = vmatpush1.msra.mxu0 0.0
    %512 = vmatprep.subr.mxu0 0.0
    %513 = vmatpush1.msra.mxu0 0.0
    %514 = vmatprep.subr.mxu0 0.0
    %515 = vmatpush1.msra.mxu0 0.0
    %516 = vmatprep.subr.mxu0 0.0
    %517 = vmatpush1.msra.mxu0 0.0
    %518 = vmatprep.subr.mxu0 0.0
    %519 = vmatpush1.msra.mxu0 0.0
    %520 = vmatprep.subr.mxu0 0.0
    %521 = vmatpush1.msra.mxu0 0.0
    %522 = vmatprep.subr.mxu0 0.0
    %523 = vmatpush1.msra.mxu0 0.0
    %524 = vmatprep.subr.mxu0 0.0
    %525 = vmatpush1.msra.mxu0 0.0
    %526 = vmatprep.subr.mxu0 0.0
    %527 = vmatpush1.msra.mxu0 0.0
    %528 = vmatprep.subr.mxu0 0.0
    %529 = vmatpush1.msra.mxu0 0.0
    %530 = vmatprep.subr.mxu0 0.0
    %531 = vmatpush1.msra.mxu0 0.0
    %532 = vmatprep.subr.mxu0 0.0
    %533 = vmatpush1.msra.mxu0 0.0
    %534 = vmatprep.mubr.f32.mxu0 0.0
    %535 = vmatmul.mubr.f32.gmra.mrb[0].mxu0 %v468
    %v536 = vpop.f32.mrb[0].mxu0
    %v537 = vadd.f32 %v84, %v536
    %v538 = vpop.f32.mrb[0].mxu0
    %539 = vdwg.mxu0
    %v541 = vsel %vm101, %v27, 0
    %543 = vmatprep.subr.mxu0 0.0
    %544 = vmatpush1.msra.mxu0 %v41
    %545 = vmatprep.subr.mxu0 0.0
    %546 = vmatpush1.msra.mxu0 %v42
    %547 = vmatprep.subr.mxu0 0.0
    %548 = vmatpush1.msra.mxu0 0.0
    %549 = vmatprep.subr.mxu0 0.0
    %550 = vmatpush1.msra.mxu0 0.0
    %551 = vmatprep.subr.mxu0 0.0
    %552 = vmatpush1.msra.mxu0 0.0
    %553 = vmatprep.subr.mxu0 0.0
    %554 = vmatpush1.msra.mxu0 0.0
    %555 = vmatprep.subr.mxu0 0.0
    %556 = vmatpush1.msra.mxu0 0.0
    %557 = vmatprep.subr.mxu0 0.0
    %558 = vmatpush1.msra.mxu0 0.0
    %559 = vmatprep.subr.mxu0 0.0
    %560 = vmatpush1.msra.mxu0 0.0
    %561 = vmatprep.subr.mxu0 0.0
    %562 = vmatpush1.msra.mxu0 0.0
    %563 = vmatprep.subr.mxu0 0.0
    %564 = vmatpush1.msra.mxu0 0.0
    %565 = vmatprep.subr.mxu0 0.0
    %566 = vmatpush1.msra.mxu0 0.0
    %567 = vmatprep.subr.mxu0 0.0
    %568 = vmatpush1.msra.mxu0 0.0
    %569 = vmatprep.subr.mxu0 0.0
    %570 = vmatpush1.msra.mxu0 0.0
    %571 = vmatprep.subr.mxu0 0.0
    %572 = vmatpush1.msra.mxu0 0.0
    %573 = vmatprep.subr.mxu0 0.0
    %574 = vmatpush1.msra.mxu0 0.0
    %575 = vmatprep.subr.mxu0 0.0
    %576 = vmatpush1.msra.mxu0 0.0
    %577 = vmatprep.subr.mxu0 0.0
    %578 = vmatpush1.msra.mxu0 0.0
    %579 = vmatprep.subr.mxu0 0.0
    %580 = vmatpush1.msra.mxu0 0.0
    %581 = vmatprep.subr.mxu0 0.0
    %582 = vmatpush1.msra.mxu0 0.0
    %583 = vmatprep.subr.mxu0 0.0
    %584 = vmatpush1.msra.mxu0 0.0
    %585 = vmatprep.subr.mxu0 0.0
    %586 = vmatpush1.msra.mxu0 0.0
    %587 = vmatprep.subr.mxu0 0.0
    %588 = vmatpush1.msra.mxu0 0.0
    %589 = vmatprep.subr.mxu0 0.0
    %590 = vmatpush1.msra.mxu0 0.0
    %591 = vmatprep.subr.mxu0 0.0
    %592 = vmatpush1.msra.mxu0 0.0
    %593 = vmatprep.subr.mxu0 0.0
    %594 = vmatpush1.msra.mxu0 0.0
    %595 = vmatprep.subr.mxu0 0.0
    %596 = vmatpush1.msra.mxu0 0.0
    %597 = vmatprep.subr.mxu0 0.0
    %598 = vmatpush1.msra.mxu0 0.0
    %599 = vmatprep.subr.mxu0 0.0
    %600 = vmatpush1.msra.mxu0 0.0
    %601 = vmatprep.subr.mxu0 0.0
    %602 = vmatpush1.msra.mxu0 0.0
    %603 = vmatprep.subr.mxu0 0.0
    %604 = vmatpush1.msra.mxu0 0.0
    %605 = vmatprep.subr.mxu0 0.0
    %606 = vmatpush1.msra.mxu0 0.0
    %607 = vmatprep.mubr.f32.mxu0 0.0
    %608 = vmatmul.mubr.f32.gmra.mrb[0].mxu0 %v541
    %v609 = vpop.f32.mrb[0].mxu0
    %v610 = vadd.f32 %v88, %v609
    %v611 = vpop.f32.mrb[0].mxu0
    %612 = vdwg.mxu0
    %v614 = vsel %vm101, %v28, 0
    %616 = vmatprep.subr.mxu0 0.0
    %617 = vmatpush1.msra.mxu0 %v43
    %618 = vmatprep.subr.mxu0 0.0
    %619 = vmatpush1.msra.mxu0 %v44
    %620 = vmatprep.subr.mxu0 0.0
    %621 = vmatpush1.msra.mxu0 0.0
    %622 = vmatprep.subr.mxu0 0.0
    %623 = vmatpush1.msra.mxu0 0.0
    %624 = vmatprep.subr.mxu0 0.0
    %625 = vmatpush1.msra.mxu0 0.0
    %626 = vmatprep.subr.mxu0 0.0
    %627 = vmatpush1.msra.mxu0 0.0
    %628 = vmatprep.subr.mxu0 0.0
    %629 = vmatpush1.msra.mxu0 0.0
    %630 = vmatprep.subr.mxu0 0.0
    %631 = vmatpush1.msra.mxu0 0.0
    %632 = vmatprep.subr.mxu0 0.0
    %633 = vmatpush1.msra.mxu0 0.0
    %634 = vmatprep.subr.mxu0 0.0
    %635 = vmatpush1.msra.mxu0 0.0
    %636 = vmatprep.subr.mxu0 0.0
    %637 = vmatpush1.msra.mxu0 0.0
    %638 = vmatprep.subr.mxu0 0.0
    %639 = vmatpush1.msra.mxu0 0.0
    %640 = vmatprep.subr.mxu0 0.0
    %641 = vmatpush1.msra.mxu0 0.0
    %642 = vmatprep.subr.mxu0 0.0
    %643 = vmatpush1.msra.mxu0 0.0
    %644 = vmatprep.subr.mxu0 0.0
    %645 = vmatpush1.msra.mxu0 0.0
    %646 = vmatprep.subr.mxu0 0.0
    %647 = vmatpush1.msra.mxu0 0.0
    %648 = vmatprep.subr.mxu0 0.0
    %649 = vmatpush1.msra.mxu0 0.0
    %650 = vmatprep.subr.mxu0 0.0
    %651 = vmatpush1.msra.mxu0 0.0
    %652 = vmatprep.subr.mxu0 0.0
    %653 = vmatpush1.msra.mxu0 0.0
    %654 = vmatprep.subr.mxu0 0.0
    %655 = vmatpush1.msra.mxu0 0.0
    %656 = vmatprep.subr.mxu0 0.0
    %657 = vmatpush1.msra.mxu0 0.0
    %658 = vmatprep.subr.mxu0 0.0
    %659 = vmatpush1.msra.mxu0 0.0
    %660 = vmatprep.subr.mxu0 0.0
    %661 = vmatpush1.msra.mxu0 0.0
    %662 = vmatprep.subr.mxu0 0.0
    %663 = vmatpush1.msra.mxu0 0.0
    %664 = vmatprep.subr.mxu0 0.0
    %665 = vmatpush1.msra.mxu0 0.0
    %666 = vmatprep.subr.mxu0 0.0
    %667 = vmatpush1.msra.mxu0 0.0
    %668 = vmatprep.subr.mxu0 0.0
    %669 = vmatpush1.msra.mxu0 0.0
    %670 = vmatprep.subr.mxu0 0.0
    %671 = vmatpush1.msra.mxu0 0.0
    %672 = vmatprep.subr.mxu0 0.0
    %673 = vmatpush1.msra.mxu0 0.0
    %674 = vmatprep.subr.mxu0 0.0
    %675 = vmatpush1.msra.mxu0 0.0
    %676 = vmatprep.subr.mxu0 0.0
    %677 = vmatpush1.msra.mxu0 0.0
    %678 = vmatprep.subr.mxu0 0.0
    %679 = vmatpush1.msra.mxu0 0.0
    %680 = vmatprep.mubr.f32.mxu0 0.0
    %681 = vmatmul.mubr.f32.gmra.mrb[0].mxu0 %v614
    %v682 = vpop.f32.mrb[0].mxu0
    %v683 = vadd.f32 %v92, %v682
    %v684 = vpop.f32.mrb[0].mxu0
    %685 = vdwg.mxu0
    %v686 = vmax.f32 %v172, 0.0
    %v687 = vmax.f32 %v245, 0.0
    %v688 = vmax.f32 %v318, 0.0
    %v689 = vmax.f32 %v391, 0.0
    %v690 = vmax.f32 %v464, 0.0
    %v691 = vmax.f32 %v537, 0.0
    %v692 = vmax.f32 %v610, 0.0
    %v693 = vmax.f32 %v683, 0.0
    %v694 = vld [vmem:[%s3] sm:$0xff]
    %v695 = vld [vmem:[%s3 + $0x8] sm:$0xff]
    %v696 = vld [vmem:[%s3 + $0x10] sm:$0xff]
    %v697 = vld [vmem:[%s3 + $0x18] sm:$0xff]
    %v698 = vld [vmem:[%s3 + $0x20] sm:$0xff]
    %v699 = vld [vmem:[%s3 + $0x28] sm:$0xff]
    %v700 = vld [vmem:[%s3 + $0x30] sm:$0xff]
    %v701 = vld [vmem:[%s3 + $0x38] sm:$0xff]
    %v702 = vld [vmem:[%s3 + $0x40] sm:$0xff]
    %v703 = vld [vmem:[%s3 + $0x48] sm:$0xff]
    %v704 = vld [vmem:[%s3 + $0x50] sm:$0xff]
    %v705 = vld [vmem:[%s3 + $0x58] sm:$0xff]
    %v706 = vld [vmem:[%s3 + $0x60] sm:$0xff]
    %v707 = vld [vmem:[%s3 + $0x68] sm:$0xff]
    %v708 = vld [vmem:[%s3 + $0x70] sm:$0xff]
    %v709 = vld [vmem:[%s3 + $0x78] sm:$0xff]
    %v710 = vld [vmem:[%s3 + $0x80] sm:$0xff]
    %v711 = vld [vmem:[%s3 + $0x88] sm:$0xff]
    %v712 = vld [vmem:[%s3 + $0x90] sm:$0xff]
    %v713 = vld [vmem:[%s3 + $0x98] sm:$0xff]
    %v714 = vld [vmem:[%s3 + $0xa0] sm:$0xff]
    %v715 = vld [vmem:[%s3 + $0xa8] sm:$0xff]
    %v716 = vld [vmem:[%s3 + $0xb0] sm:$0xff]
    %v717 = vld [vmem:[%s3 + $0xb8] sm:$0xff]
    %v718 = vld [vmem:[%s3 + $0xc0] sm:$0xff]
    %v719 = vld [vmem:[%s3 + $0xc8] sm:$0xff]
    %v720 = vld [vmem:[%s3 + $0xd0] sm:$0xff]
    %v721 = vld [vmem:[%s3 + $0xd8] sm:$0xff]
    %v722 = vld [vmem:[%s3 + $0xe0] sm:$0xff]
    %v723 = vld [vmem:[%s3 + $0xe8] sm:$0xff]
    %v724 = vld [vmem:[%s3 + $0xf0] sm:$0xff]
    %v725 = vld [vmem:[%s3 + $0xf8] sm:$0xff]
    %v726 = vld [vmem:[%s3 + $0x100] sm:$0xff]
    %v727 = vld [vmem:[%s3 + $0x108] sm:$0xff]
    %v728 = vld [vmem:[%s3 + $0x110] sm:$0xff]
    %v729 = vld [vmem:[%s3 + $0x118] sm:$0xff]
    %v730 = vld [vmem:[%s3 + $0x120] sm:$0xff]
    %v731 = vld [vmem:[%s3 + $0x128] sm:$0xff]
    %v732 = vld [vmem:[%s3 + $0x130] sm:$0xff]
    %v733 = vld [vmem:[%s3 + $0x138] sm:$0xff]
    %v734 = vld [vmem:[%s3 + $0x140] sm:$0xff]
    %v735 = vld [vmem:[%s3 + $0x148] sm:$0xff]
    %v736 = vld [vmem:[%s3 + $0x150] sm:$0xff]
    %v737 = vld [vmem:[%s3 + $0x158] sm:$0xff]
    %v738 = vld [vmem:[%s3 + $0x160] sm:$0xff]
    %v739 = vld [vmem:[%s3 + $0x168] sm:$0xff]
    %v740 = vld [vmem:[%s3 + $0x170] sm:$0xff]
    %v741 = vld [vmem:[%s3 + $0x178] sm:$0xff]
    %v742 = vld [vmem:[%s3 + $0x180] sm:$0xff]
    %v743 = vld [vmem:[%s3 + $0x188] sm:$0xff]
    %v744 = vld [vmem:[%s3 + $0x190] sm:$0xff]
    %v745 = vld [vmem:[%s3 + $0x198] sm:$0xff]
    %v746 = vld [vmem:[%s3 + $0x1a0] sm:$0xff]
    %v747 = vld [vmem:[%s3 + $0x1a8] sm:$0xff]
    %v748 = vld [vmem:[%s3 + $0x1b0] sm:$0xff]
    %v749 = vld [vmem:[%s3 + $0x1b8] sm:$0xff]
    %v750 = vld [vmem:[%s3 + $0x1c0] sm:$0xff]
    %v751 = vld [vmem:[%s3 + $0x1c8] sm:$0xff]
    %v752 = vld [vmem:[%s3 + $0x1d0] sm:$0xff]
    %v753 = vld [vmem:[%s3 + $0x1d8] sm:$0xff]
    %v754 = vld [vmem:[%s3 + $0x1e0] sm:$0xff]
    %v755 = vld [vmem:[%s3 + $0x1e8] sm:$0xff]
    %v756 = vld [vmem:[%s3 + $0x1f0] sm:$0xff]
    %v757 = vld [vmem:[%s3 + $0x1f8] sm:$0xff]
    %v758 = vld [vmem:[%s3 + $0x200] sm:$0xff]
    %v759 = vld [vmem:[%s3 + $0x208] sm:$0xff]
    %v760 = vld [vmem:[%s3 + $0x210] sm:$0xff]
    %v761 = vld [vmem:[%s3 + $0x218] sm:$0xff]
    %v762 = vld [vmem:[%s3 + $0x220] sm:$0xff]
    %v763 = vld [vmem:[%s3 + $0x228] sm:$0xff]
    %v764 = vld [vmem:[%s3 + $0x230] sm:$0xff]
    %v765 = vld [vmem:[%s3 + $0x238] sm:$0xff]
    %v766 = vld [vmem:[%s3 + $0x240] sm:$0xff]
    %v767 = vld [vmem:[%s3 + $0x248] sm:$0xff]
    %v768 = vld [vmem:[%s3 + $0x250] sm:$0xff]
    %v769 = vld [vmem:[%s3 + $0x258] sm:$0xff]
    %v770 = vld [vmem:[%s3 + $0x260] sm:$0xff]
    %v771 = vld [vmem:[%s3 + $0x268] sm:$0xff]
    %v772 = vld [vmem:[%s3 + $0x270] sm:$0xff]
    %v773 = vld [vmem:[%s3 + $0x278] sm:$0xff]
    %v774 = vld [vmem:[%s4] sm:$0x1]
    %v775 = vld [vmem:[%s4 + $0x1] sm:$0x1]
    %v776 = vld [vmem:[%s4 + $0x2] sm:$0x1]
    %v777 = vld [vmem:[%s4 + $0x3] sm:$0x1]
    %v778 = vld [vmem:[%s4 + $0x4] sm:$0x1]
    %v779 = vld [vmem:[%s4 + $0x5] sm:$0x1]
    %v780 = vld [vmem:[%s4 + $0x6] sm:$0x1]
    %v781 = vld [vmem:[%s4 + $0x7] sm:$0x1]
    %v790 = vlaneseq
    %v791 = vshrl.u32 %v790, 7
    %v792 = vsub.s32 0, %v791
    %v793 = vrot.slane %v774, %v792
    %v794 = vlaneseq
    %v795 = vshrl.u32 %v794, 7
    %v796 = vsub.s32 0, %v795
    %v797 = vrot.slane %v775, %v796
    %v798 = vlaneseq
    %v799 = vshrl.u32 %v798, 7
    %v800 = vsub.s32 0, %v799
    %v801 = vrot.slane %v776, %v800
    %v802 = vlaneseq
    %v803 = vshrl.u32 %v802, 7
    %v804 = vsub.s32 0, %v803
    %v805 = vrot.slane %v777, %v804
    %v806 = vlaneseq
    %v807 = vshrl.u32 %v806, 7
    %v808 = vsub.s32 0, %v807
    %v809 = vrot.slane %v778, %v808
    %v810 = vlaneseq
    %v811 = vshrl.u32 %v810, 7
    %v812 = vsub.s32 0, %v811
    %v813 = vrot.slane %v779, %v812
    %v814 = vlaneseq
    %v815 = vshrl.u32 %v814, 7
    %v816 = vsub.s32 0, %v815
    %v817 = vrot.slane %v780, %v816
    %v818 = vlaneseq
    %v819 = vshrl.u32 %v818, 7
    %v820 = vsub.s32 0, %v819
    %v821 = vrot.slane %v781, %v820
    %vm830 = vcmask 654336
    %v832 = vsel %vm830, %v686, 0
    %834 = vmatprep.subr.mxu0 0.0
    %835 = vmatpush1.msra.mxu0 %v694
    %836 = vmatprep.subr.mxu0 0.0
    %837 = vmatpush1.msra.mxu0 %v695
    %838 = vmatprep.subr.mxu0 0.0
    %839 = vmatpush1.msra.mxu0 %v696
    %840 = vmatprep.subr.mxu0 0.0
    %841 = vmatpush1.msra.mxu0 %v697
    %842 = vmatprep.subr.mxu0 0.0
    %843 = vmatpush1.msra.mxu0 %v698
    %844 = vmatprep.subr.mxu0 0.0
    %845 = vmatpush1.msra.mxu0 %v699
    %846 = vmatprep.subr.mxu0 0.0
    %847 = vmatpush1.msra.mxu0 %v700
    %848 = vmatprep.subr.mxu0 0.0
    %849 = vmatpush1.msra.mxu0 %v701
    %850 = vmatprep.subr.mxu0 0.0
    %851 = vmatpush1.msra.mxu0 %v702
    %852 = vmatprep.subr.mxu0 0.0
    %853 = vmatpush1.msra.mxu0 %v703
    %854 = vmatprep.subr.mxu0 0.0
    %855 = vmatpush1.msra.mxu0 0.0
    %856 = vmatprep.subr.mxu0 0.0
    %857 = vmatpush1.msra.mxu0 0.0
    %858 = vmatprep.subr.mxu0 0.0
    %859 = vmatpush1.msra.mxu0 0.0
    %860 = vmatprep.subr.mxu0 0.0
    %861 = vmatpush1.msra.mxu0 0.0
    %862 = vmatprep.subr.mxu0 0.0
    %863 = vmatpush1.msra.mxu0 0.0
    %864 = vmatprep.subr.mxu0 0.0
    %865 = vmatpush1.msra.mxu0 0.0
    %866 = vmatprep.subr.mxu0 0.0
    %867 = vmatpush1.msra.mxu0 0.0
    %868 = vmatprep.subr.mxu0 0.0
    %869 = vmatpush1.msra.mxu0 0.0
    %870 = vmatprep.subr.mxu0 0.0
    %871 = vmatpush1.msra.mxu0 0.0
    %872 = vmatprep.subr.mxu0 0.0
    %873 = vmatpush1.msra.mxu0 0.0
    %874 = vmatprep.subr.mxu0 0.0
    %875 = vmatpush1.msra.mxu0 0.0
    %876 = vmatprep.subr.mxu0 0.0
    %877 = vmatpush1.msra.mxu0 0.0
    %878 = vmatprep.subr.mxu0 0.0
    %879 = vmatpush1.msra.mxu0 0.0
    %880 = vmatprep.subr.mxu0 0.0
    %881 = vmatpush1.msra.mxu0 0.0
    %882 = vmatprep.subr.mxu0 0.0
    %883 = vmatpush1.msra.mxu0 0.0
    %884 = vmatprep.subr.mxu0 0.0
    %885 = vmatpush1.msra.mxu0 0.0
    %886 = vmatprep.subr.mxu0 0.0
    %887 = vmatpush1.msra.mxu0 0.0
    %888 = vmatprep.subr.mxu0 0.0
    %889 = vmatpush1.msra.mxu0 0.0
    %890 = vmatprep.subr.mxu0 0.0
    %891 = vmatpush1.msra.mxu0 0.0
    %892 = vmatprep.subr.mxu0 0.0
    %893 = vmatpush1.msra.mxu0 0.0
    %894 = vmatprep.subr.mxu0 0.0
    %895 = vmatpush1.msra.mxu0 0.0
    %896 = vmatprep.subr.mxu0 0.0
    %897 = vmatpush1.msra.mxu0 0.0
    %898 = vmatprep.mubr.f32.mxu0 0.0
    %899 = vmatmul.mubr.f32.gmra.mrb[0].mxu0 %v832
    %v900 = vpop.f32.mrb[0].mxu0
    %v901 = vadd.f32 %v793, %v900
    %v902 = vpop.f32.mrb[0].mxu0
    %903 = vdwg.mxu0
    %v905 = vsel %vm830, %v687, 0
    %907 = vmatprep.subr.mxu0 0.0
    %908 = vmatpush1.msra.mxu0 %v704
    %909 = vmatprep.subr.mxu0 0.0
    %910 = vmatpush1.msra.mxu0 %v705
    %911 = vmatprep.subr.mxu0 0.0
    %912 = vmatpush1.msra.mxu0 %v706
    %913 = vmatprep.subr.mxu0 0.0
    %914 = vmatpush1.msra.mxu0 %v707
    %915 = vmatprep.subr.mxu0 0.0
    %916 = vmatpush1.msra.mxu0 %v708
    %917 = vmatprep.subr.mxu0 0.0
    %918 = vmatpush1.msra.mxu0 %v709
    %919 = vmatprep.subr.mxu0 0.0
    %920 = vmatpush1.msra.mxu0 %v710
    %921 = vmatprep.subr.mxu0 0.0
    %922 = vmatpush1.msra.mxu0 %v711
    %923 = vmatprep.subr.mxu0 0.0
    %924 = vmatpush1.msra.mxu0 %v712
    %925 = vmatprep.subr.mxu0 0.0
    %926 = vmatpush1.msra.mxu0 %v713
    %927 = vmatprep.subr.mxu0 0.0
    %928 = vmatpush1.msra.mxu0 0.0
    %929 = vmatprep.subr.mxu0 0.0
    %930 = vmatpush1.msra.mxu0 0.0
    %931 = vmatprep.subr.mxu0 0.0
    %932 = vmatpush1.msra.mxu0 0.0
    %933 = vmatprep.subr.mxu0 0.0
    %934 = vmatpush1.msra.mxu0 0.0
    %935 = vmatprep.subr.mxu0 0.0
    %936 = vmatpush1.msra.mxu0 0.0
    %937 = vmatprep.subr.mxu0 0.0
    %938 = vmatpush1.msra.mxu0 0.0
    %939 = vmatprep.subr.mxu0 0.0
    %940 = vmatpush1.msra.mxu0 0.0
    %941 = vmatprep.subr.mxu0 0.0
    %942 = vmatpush1.msra.mxu0 0.0
    %943 = vmatprep.subr.mxu0 0.0
    %944 = vmatpush1.msra.mxu0 0.0
    %945 = vmatprep.subr.mxu0 0.0
    %946 = vmatpush1.msra.mxu0 0.0
    %947 = vmatprep.subr.mxu0 0.0
    %948 = vmatpush1.msra.mxu0 0.0
    %949 = vmatprep.subr.mxu0 0.0
    %950 = vmatpush1.msra.mxu0 0.0
    %951 = vmatprep.subr.mxu0 0.0
    %952 = vmatpush1.msra.mxu0 0.0
    %953 = vmatprep.subr.mxu0 0.0
    %954 = vmatpush1.msra.mxu0 0.0
    %955 = vmatprep.subr.mxu0 0.0
    %956 = vmatpush1.msra.mxu0 0.0
    %957 = vmatprep.subr.mxu0 0.0
    %958 = vmatpush1.msra.mxu0 0.0
    %959 = vmatprep.subr.mxu0 0.0
    %960 = vmatpush1.msra.mxu0 0.0
    %961 = vmatprep.subr.mxu0 0.0
    %962 = vmatpush1.msra.mxu0 0.0
    %963 = vmatprep.subr.mxu0 0.0
    %964 = vmatpush1.msra.mxu0 0.0
    %965 = vmatprep.subr.mxu0 0.0
    %966 = vmatpush1.msra.mxu0 0.0
    %967 = vmatprep.subr.mxu0 0.0
    %968 = vmatpush1.msra.mxu0 0.0
    %969 = vmatprep.subr.mxu0 0.0
    %970 = vmatpush1.msra.mxu0 0.0
    %971 = vmatprep.mubr.f32.mxu0 0.0
    %972 = vmatmul.mubr.f32.gmra.mrb[0].mxu0 %v905
    %v973 = vpop.f32.mrb[0].mxu0
    %v974 = vadd.f32 %v797, %v973
    %v975 = vpop.f32.mrb[0].mxu0
    %976 = vdwg.mxu0
    %v978 = vsel %vm830, %v688, 0
    %980 = vmatprep.subr.mxu0 0.0
    %981 = vmatpush1.msra.mxu0 %v714
    %982 = vmatprep.subr.mxu0 0.0
    %983 = vmatpush1.msra.mxu0 %v715
    %984 = vmatprep.subr.mxu0 0.0
    %985 = vmatpush1.msra.mxu0 %v716
    %986 = vmatprep.subr.mxu0 0.0
    %987 = vmatpush1.msra.mxu0 %v717
    %988 = vmatprep.subr.mxu0 0.0
    %989 = vmatpush1.msra.mxu0 %v718
    %990 = vmatprep.subr.mxu0 0.0
    %991 = vmatpush1.msra.mxu0 %v719
    %992 = vmatprep.subr.mxu0 0.0
    %993 = vmatpush1.msra.mxu0 %v720
    %994 = vmatprep.subr.mxu0 0.0
    %995 = vmatpush1.msra.mxu0 %v721
    %996 = vmatprep.subr.mxu0 0.0
    %997 = vmatpush1.msra.mxu0 %v722
    %998 = vmatprep.subr.mxu0 0.0
    %999 = vmatpush1.msra.mxu0 %v723
    %1000 = vmatprep.subr.mxu0 0.0
    %1001 = vmatpush1.msra.mxu0 0.0
    %1002 = vmatprep.subr.mxu0 0.0
    %1003 = vmatpush1.msra.mxu0 0.0
    %1004 = vmatprep.subr.mxu0 0.0
    %1005 = vmatpush1.msra.mxu0 0.0
    %1006 = vmatprep.subr.mxu0 0.0
    %1007 = vmatpush1.msra.mxu0 0.0
    %1008 = vmatprep.subr.mxu0 0.0
    %1009 = vmatpush1.msra.mxu0 0.0
    %1010 = vmatprep.subr.mxu0 0.0
    %1011 = vmatpush1.msra.mxu0 0.0
    %1012 = vmatprep.subr.mxu0 0.0
    %1013 = vmatpush1.msra.mxu0 0.0
    %1014 = vmatprep.subr.mxu0 0.0
    %1015 = vmatpush1.msra.mxu0 0.0
    %1016 = vmatprep.subr.mxu0 0.0
    %1017 = vmatpush1.msra.mxu0 0.0
    %1018 = vmatprep.subr.mxu0 0.0
    %1019 = vmatpush1.msra.mxu0 0.0
    %1020 = vmatprep.subr.mxu0 0.0
    %1021 = vmatpush1.msra.mxu0 0.0
    %1022 = vmatprep.subr.mxu0 0.0
    %1023 = vmatpush1.msra.mxu0 0.0
    %1024 = vmatprep.subr.mxu0 0.0
    %1025 = vmatpush1.msra.mxu0 0.0
    %1026 = vmatprep.subr.mxu0 0.0
    %1027 = vmatpush1.msra.mxu0 0.0
    %1028 = vmatprep.subr.mxu0 0.0
    %1029 = vmatpush1.msra.mxu0 0.0
    %1030 = vmatprep.subr.mxu0 0.0
    %1031 = vmatpush1.msra.mxu0 0.0
    %1032 = vmatprep.subr.mxu0 0.0
    %1033 = vmatpush1.msra.mxu0 0.0
    %1034 = vmatprep.subr.mxu0 0.0
    %1035 = vmatpush1.msra.mxu0 0.0
    %1036 = vmatprep.subr.mxu0 0.0
    %1037 = vmatpush1.msra.mxu0 0.0
    %1038 = vmatprep.subr.mxu0 0.0
    %1039 = vmatpush1.msra.mxu0 0.0
    %1040 = vmatprep.subr.mxu0 0.0
    %1041 = vmatpush1.msra.mxu0 0.0
    %1042 = vmatprep.subr.mxu0 0.0
    %1043 = vmatpush1.msra.mxu0 0.0
    %1044 = vmatprep.mubr.f32.mxu0 0.0
    %1045 = vmatmul.mubr.f32.gmra.mrb[0].mxu0 %v978
    %v1046 = vpop.f32.mrb[0].mxu0
    %v1047 = vadd.f32 %v801, %v1046
    %v1048 = vpop.f32.mrb[0].mxu0
    %1049 = vdwg.mxu0
    %v1051 = vsel %vm830, %v689, 0
    %1053 = vmatprep.subr.mxu0 0.0
    %1054 = vmatpush1.msra.mxu0 %v724
    %1055 = vmatprep.subr.mxu0 0.0
    %1056 = vmatpush1.msra.mxu0 %v725
    %1057 = vmatprep.subr.mxu0 0.0
    %1058 = vmatpush1.msra.mxu0 %v726
    %1059 = vmatprep.subr.mxu0 0.0
    %1060 = vmatpush1.msra.mxu0 %v727
    %1061 = vmatprep.subr.mxu0 0.0
    %1062 = vmatpush1.msra.mxu0 %v728
    %1063 = vmatprep.subr.mxu0 0.0
    %1064 = vmatpush1.msra.mxu0 %v729
    %1065 = vmatprep.subr.mxu0 0.0
    %1066 = vmatpush1.msra.mxu0 %v730
    %1067 = vmatprep.subr.mxu0 0.0
    %1068 = vmatpush1.msra.mxu0 %v731
    %1069 = vmatprep.subr.mxu0 0.0
    %1070 = vmatpush1.msra.mxu0 %v732
    %1071 = vmatprep.subr.mxu0 0.0
    %1072 = vmatpush1.msra.mxu0 %v733
    %1073 = vmatprep.subr.mxu0 0.0
    %1074 = vmatpush1.msra.mxu0 0.0
    %1075 = vmatprep.subr.mxu0 0.0
    %1076 = vmatpush1.msra.mxu0 0.0
    %1077 = vmatprep.subr.mxu0 0.0
    %1078 = vmatpush1.msra.mxu0 0.0
    %1079 = vmatprep.subr.mxu0 0.0
    %1080 = vmatpush1.msra.mxu0 0.0
    %1081 = vmatprep.subr.mxu0 0.0
    %1082 = vmatpush1.msra.mxu0 0.0
    %1083 = vmatprep.subr.mxu0 0.0
    %1084 = vmatpush1.msra.mxu0 0.0
    %1085 = vmatprep.subr.mxu0 0.0
    %1086 = vmatpush1.msra.mxu0 0.0
    %1087 = vmatprep.subr.mxu0 0.0
    %1088 = vmatpush1.msra.mxu0 0.0
    %1089 = vmatprep.subr.mxu0 0.0
    %1090 = vmatpush1.msra.mxu0 0.0
    %1091 = vmatprep.subr.mxu0 0.0
    %1092 = vmatpush1.msra.mxu0 0.0
    %1093 = vmatprep.subr.mxu0 0.0
    %1094 = vmatpush1.msra.mxu0 0.0
    %1095 = vmatprep.subr.mxu0 0.0
    %1096 = vmatpush1.msra.mxu0 0.0
    %1097 = vmatprep.subr.mxu0 0.0
    %1098 = vmatpush1.msra.mxu0 0.0
    %1099 = vmatprep.subr.mxu0 0.0
    %1100 = vmatpush1.msra.mxu0 0.0
    %1101 = vmatprep.subr.mxu0 0.0
    %1102 = vmatpush1.msra.mxu0 0.0
    %1103 = vmatprep.subr.mxu0 0.0
    %1104 = vmatpush1.msra.mxu0 0.0
    %1105 = vmatprep.subr.mxu0 0.0
    %1106 = vmatpush1.msra.mxu0 0.0
    %1107 = vmatprep.subr.mxu0 0.0
    %1108 = vmatpush1.msra.mxu0 0.0
    %1109 = vmatprep.subr.mxu0 0.0
    %1110 = vmatpush1.msra.mxu0 0.0
    %1111 = vmatprep.subr.mxu0 0.0
    %1112 = vmatpush1.msra.mxu0 0.0
    %1113 = vmatprep.subr.mxu0 0.0
    %1114 = vmatpush1.msra.mxu0 0.0
    %1115 = vmatprep.subr.mxu0 0.0
    %1116 = vmatpush1.msra.mxu0 0.0
    %1117 = vmatprep.mubr.f32.mxu0 0.0
    %1118 = vmatmul.mubr.f32.gmra.mrb[0].mxu0 %v1051
    %v1119 = vpop.f32.mrb[0].mxu0
    %v1120 = vadd.f32 %v805, %v1119
    %v1121 = vpop.f32.mrb[0].mxu0
    %1122 = vdwg.mxu0
    %v1124 = vsel %vm830, %v690, 0
    %1126 = vmatprep.subr.mxu0 0.0
    %1127 = vmatpush1.msra.mxu0 %v734
    %1128 = vmatprep.subr.mxu0 0.0
    %1129 = vmatpush1.msra.mxu0 %v735
    %1130 = vmatprep.subr.mxu0 0.0
    %1131 = vmatpush1.msra.mxu0 %v736
    %1132 = vmatprep.subr.mxu0 0.0
    %1133 = vmatpush1.msra.mxu0 %v737
    %1134 = vmatprep.subr.mxu0 0.0
    %1135 = vmatpush1.msra.mxu0 %v738
    %1136 = vmatprep.subr.mxu0 0.0
    %1137 = vmatpush1.msra.mxu0 %v739
    %1138 = vmatprep.subr.mxu0 0.0
    %1139 = vmatpush1.msra.mxu0 %v740
    %1140 = vmatprep.subr.mxu0 0.0
    %1141 = vmatpush1.msra.mxu0 %v741
    %1142 = vmatprep.subr.mxu0 0.0
    %1143 = vmatpush1.msra.mxu0 %v742
    %1144 = vmatprep.subr.mxu0 0.0
    %1145 = vmatpush1.msra.mxu0 %v743
    %1146 = vmatprep.subr.mxu0 0.0
    %1147 = vmatpush1.msra.mxu0 0.0
    %1148 = vmatprep.subr.mxu0 0.0
    %1149 = vmatpush1.msra.mxu0 0.0
    %1150 = vmatprep.subr.mxu0 0.0
    %1151 = vmatpush1.msra.mxu0 0.0
    %1152 = vmatprep.subr.mxu0 0.0
    %1153 = vmatpush1.msra.mxu0 0.0
    %1154 = vmatprep.subr.mxu0 0.0
    %1155 = vmatpush1.msra.mxu0 0.0
    %1156 = vmatprep.subr.mxu0 0.0
    %1157 = vmatpush1.msra.mxu0 0.0
    %1158 = vmatprep.subr.mxu0 0.0
    %1159 = vmatpush1.msra.mxu0 0.0
    %1160 = vmatprep.subr.mxu0 0.0
    %1161 = vmatpush1.msra.mxu0 0.0
    %1162 = vmatprep.subr.mxu0 0.0
    %1163 = vmatpush1.msra.mxu0 0.0
    %1164 = vmatprep.subr.mxu0 0.0
    %1165 = vmatpush1.msra.mxu0 0.0
    %1166 = vmatprep.subr.mxu0 0.0
    %1167 = vmatpush1.msra.mxu0 0.0
    %1168 = vmatprep.subr.mxu0 0.0
    %1169 = vmatpush1.msra.mxu0 0.0
    %1170 = vmatprep.subr.mxu0 0.0
    %1171 = vmatpush1.msra.mxu0 0.0
    %1172 = vmatprep.subr.mxu0 0.0
    %1173 = vmatpush1.msra.mxu0 0.0
    %1174 = vmatprep.subr.mxu0 0.0
    %1175 = vmatpush1.msra.mxu0 0.0
    %1176 = vmatprep.subr.mxu0 0.0
    %1177 = vmatpush1.msra.mxu0 0.0
    %1178 = vmatprep.subr.mxu0 0.0
    %1179 = vmatpush1.msra.mxu0 0.0
    %1180 = vmatprep.subr.mxu0 0.0
    %1181 = vmatpush1.msra.mxu0 0.0
    %1182 = vmatprep.subr.mxu0 0.0
    %1183 = vmatpush1.msra.mxu0 0.0
    %1184 = vmatprep.subr.mxu0 0.0
    %1185 = vmatpush1.msra.mxu0 0.0
    %1186 = vmatprep.subr.mxu0 0.0
    %1187 = vmatpush1.msra.mxu0 0.0
    %1188 = vmatprep.subr.mxu0 0.0
    %1189 = vmatpush1.msra.mxu0 0.0
    %1190 = vmatprep.mubr.f32.mxu0 0.0
    %1191 = vmatmul.mubr.f32.gmra.mrb[0].mxu0 %v1124
    %v1192 = vpop.f32.mrb[0].mxu0
    %v1193 = vadd.f32 %v809, %v1192
    %v1194 = vpop.f32.mrb[0].mxu0
    %1195 = vdwg.mxu0
    %v1197 = vsel %vm830, %v691, 0
    %1199 = vmatprep.subr.mxu0 0.0
    %1200 = vmatpush1.msra.mxu0 %v744
    %1201 = vmatprep.subr.mxu0 0.0
    %1202 = vmatpush1.msra.mxu0 %v745
    %1203 = vmatprep.subr.mxu0 0.0
    %1204 = vmatpush1.msra.mxu0 %v746
    %1205 = vmatprep.subr.mxu0 0.0
    %1206 = vmatpush1.msra.mxu0 %v747
    %1207 = vmatprep.subr.mxu0 0.0
    %1208 = vmatpush1.msra.mxu0 %v748
    %1209 = vmatprep.subr.mxu0 0.0
    %1210 = vmatpush1.msra.mxu0 %v749
    %1211 = vmatprep.subr.mxu0 0.0
    %1212 = vmatpush1.msra.mxu0 %v750
    %1213 = vmatprep.subr.mxu0 0.0
    %1214 = vmatpush1.msra.mxu0 %v751
    %1215 = vmatprep.subr.mxu0 0.0
    %1216 = vmatpush1.msra.mxu0 %v752
    %1217 = vmatprep.subr.mxu0 0.0
    %1218 = vmatpush1.msra.mxu0 %v753
    %1219 = vmatprep.subr.mxu0 0.0
    %1220 = vmatpush1.msra.mxu0 0.0
    %1221 = vmatprep.subr.mxu0 0.0
    %1222 = vmatpush1.msra.mxu0 0.0
    %1223 = vmatprep.subr.mxu0 0.0
    %1224 = vmatpush1.msra.mxu0 0.0
    %1225 = vmatprep.subr.mxu0 0.0
    %1226 = vmatpush1.msra.mxu0 0.0
    %1227 = vmatprep.subr.mxu0 0.0
    %1228 = vmatpush1.msra.mxu0 0.0
    %1229 = vmatprep.subr.mxu0 0.0
    %1230 = vmatpush1.msra.mxu0 0.0
    %1231 = vmatprep.subr.mxu0 0.0
    %1232 = vmatpush1.msra.mxu0 0.0
    %1233 = vmatprep.subr.mxu0 0.0
    %1234 = vmatpush1.msra.mxu0 0.0
    %1235 = vmatprep.subr.mxu0 0.0
    %1236 = vmatpush1.msra.mxu0 0.0
    %1237 = vmatprep.subr.mxu0 0.0
    %1238 = vmatpush1.msra.mxu0 0.0
    %1239 = vmatprep.subr.mxu0 0.0
    %1240 = vmatpush1.msra.mxu0 0.0
    %1241 = vmatprep.subr.mxu0 0.0
    %1242 = vmatpush1.msra.mxu0 0.0
    %1243 = vmatprep.subr.mxu0 0.0
    %1244 = vmatpush1.msra.mxu0 0.0
    %1245 = vmatprep.subr.mxu0 0.0
    %1246 = vmatpush1.msra.mxu0 0.0
    %1247 = vmatprep.subr.mxu0 0.0
    %1248 = vmatpush1.msra.mxu0 0.0
    %1249 = vmatprep.subr.mxu0 0.0
    %1250 = vmatpush1.msra.mxu0 0.0
    %1251 = vmatprep.subr.mxu0 0.0
    %1252 = vmatpush1.msra.mxu0 0.0
    %1253 = vmatprep.subr.mxu0 0.0
    %1254 = vmatpush1.msra.mxu0 0.0
    %1255 = vmatprep.subr.mxu0 0.0
    %1256 = vmatpush1.msra.mxu0 0.0
    %1257 = vmatprep.subr.mxu0 0.0
    %1258 = vmatpush1.msra.mxu0 0.0
    %1259 = vmatprep.subr.mxu0 0.0
    %1260 = vmatpush1.msra.mxu0 0.0
    %1261 = vmatprep.subr.mxu0 0.0
    %1262 = vmatpush1.msra.mxu0 0.0
    %1263 = vmatprep.mubr.f32.mxu0 0.0
    %1264 = vmatmul.mubr.f32.gmra.mrb[0].mxu0 %v1197
    %v1265 = vpop.f32.mrb[0].mxu0
    %v1266 = vadd.f32 %v813, %v1265
    %v1267 = vpop.f32.mrb[0].mxu0
    %1268 = vdwg.mxu0
    %v1270 = vsel %vm830, %v692, 0
    %1272 = vmatprep.subr.mxu0 0.0
    %1273 = vmatpush1.msra.mxu0 %v754
    %1274 = vmatprep.subr.mxu0 0.0
    %1275 = vmatpush1.msra.mxu0 %v755
    %1276 = vmatprep.subr.mxu0 0.0
    %1277 = vmatpush1.msra.mxu0 %v756
    %1278 = vmatprep.subr.mxu0 0.0
    %1279 = vmatpush1.msra.mxu0 %v757
    %1280 = vmatprep.subr.mxu0 0.0
    %1281 = vmatpush1.msra.mxu0 %v758
    %1282 = vmatprep.subr.mxu0 0.0
    %1283 = vmatpush1.msra.mxu0 %v759
    %1284 = vmatprep.subr.mxu0 0.0
    %1285 = vmatpush1.msra.mxu0 %v760
    %1286 = vmatprep.subr.mxu0 0.0
    %1287 = vmatpush1.msra.mxu0 %v761
    %1288 = vmatprep.subr.mxu0 0.0
    %1289 = vmatpush1.msra.mxu0 %v762
    %1290 = vmatprep.subr.mxu0 0.0
    %1291 = vmatpush1.msra.mxu0 %v763
    %1292 = vmatprep.subr.mxu0 0.0
    %1293 = vmatpush1.msra.mxu0 0.0
    %1294 = vmatprep.subr.mxu0 0.0
    %1295 = vmatpush1.msra.mxu0 0.0
    %1296 = vmatprep.subr.mxu0 0.0
    %1297 = vmatpush1.msra.mxu0 0.0
    %1298 = vmatprep.subr.mxu0 0.0
    %1299 = vmatpush1.msra.mxu0 0.0
    %1300 = vmatprep.subr.mxu0 0.0
    %1301 = vmatpush1.msra.mxu0 0.0
    %1302 = vmatprep.subr.mxu0 0.0
    %1303 = vmatpush1.msra.mxu0 0.0
    %1304 = vmatprep.subr.mxu0 0.0
    %1305 = vmatpush1.msra.mxu0 0.0
    %1306 = vmatprep.subr.mxu0 0.0
    %1307 = vmatpush1.msra.mxu0 0.0
    %1308 = vmatprep.subr.mxu0 0.0
    %1309 = vmatpush1.msra.mxu0 0.0
    %1310 = vmatprep.subr.mxu0 0.0
    %1311 = vmatpush1.msra.mxu0 0.0
    %1312 = vmatprep.subr.mxu0 0.0
    %1313 = vmatpush1.msra.mxu0 0.0
    %1314 = vmatprep.subr.mxu0 0.0
    %1315 = vmatpush1.msra.mxu0 0.0
    %1316 = vmatprep.subr.mxu0 0.0
    %1317 = vmatpush1.msra.mxu0 0.0
    %1318 = vmatprep.subr.mxu0 0.0
    %1319 = vmatpush1.msra.mxu0 0.0
    %1320 = vmatprep.subr.mxu0 0.0
    %1321 = vmatpush1.msra.mxu0 0.0
    %1322 = vmatprep.subr.mxu0 0.0
    %1323 = vmatpush1.msra.mxu0 0.0
    %1324 = vmatprep.subr.mxu0 0.0
    %1325 = vmatpush1.msra.mxu0 0.0
    %1326 = vmatprep.subr.mxu0 0.0
    %1327 = vmatpush1.msra.mxu0 0.0
    %1328 = vmatprep.subr.mxu0 0.0
    %1329 = vmatpush1.msra.mxu0 0.0
    %1330 = vmatprep.subr.mxu0 0.0
    %1331 = vmatpush1.msra.mxu0 0.0
    %1332 = vmatprep.subr.mxu0 0.0
    %1333 = vmatpush1.msra.mxu0 0.0
    %1334 = vmatprep.subr.mxu0 0.0
    %1335 = vmatpush1.msra.mxu0 0.0
    %1336 = vmatprep.mubr.f32.mxu0 0.0
    %1337 = vmatmul.mubr.f32.gmra.mrb[0].mxu0 %v1270
    %v1338 = vpop.f32.mrb[0].mxu0
    %v1339 = vadd.f32 %v817, %v1338
    %v1340 = vpop.f32.mrb[0].mxu0
    %1341 = vdwg.mxu0
    %v1343 = vsel %vm830, %v693, 0
    %1345 = vmatprep.subr.mxu0 0.0
    %1346 = vmatpush1.msra.mxu0 %v764
    %1347 = vmatprep.subr.mxu0 0.0
    %1348 = vmatpush1.msra.mxu0 %v765
    %1349 = vmatprep.subr.mxu0 0.0
    %1350 = vmatpush1.msra.mxu0 %v766
    %1351 = vmatprep.subr.mxu0 0.0
    %1352 = vmatpush1.msra.mxu0 %v767
    %1353 = vmatprep.subr.mxu0 0.0
    %1354 = vmatpush1.msra.mxu0 %v768
    %1355 = vmatprep.subr.mxu0 0.0
    %1356 = vmatpush1.msra.mxu0 %v769
    %1357 = vmatprep.subr.mxu0 0.0
    %1358 = vmatpush1.msra.mxu0 %v770
    %1359 = vmatprep.subr.mxu0 0.0
    %1360 = vmatpush1.msra.mxu0 %v771
    %1361 = vmatprep.subr.mxu0 0.0
    %1362 = vmatpush1.msra.mxu0 %v772
    %1363 = vmatprep.subr.mxu0 0.0
    %1364 = vmatpush1.msra.mxu0 %v773
    %1365 = vmatprep.subr.mxu0 0.0
    %1366 = vmatpush1.msra.mxu0 0.0
    %1367 = vmatprep.subr.mxu0 0.0
    %1368 = vmatpush1.msra.mxu0 0.0
    %1369 = vmatprep.subr.mxu0 0.0
    %1370 = vmatpush1.msra.mxu0 0.0
    %1371 = vmatprep.subr.mxu0 0.0
    %1372 = vmatpush1.msra.mxu0 0.0
    %1373 = vmatprep.subr.mxu0 0.0
    %1374 = vmatpush1.msra.mxu0 0.0
    %1375 = vmatprep.subr.mxu0 0.0
    %1376 = vmatpush1.msra.mxu0 0.0
    %1377 = vmatprep.subr.mxu0 0.0
    %1378 = vmatpush1.msra.mxu0 0.0
    %1379 = vmatprep.subr.mxu0 0.0
    %1380 = vmatpush1.msra.mxu0 0.0
    %1381 = vmatprep.subr.mxu0 0.0
    %1382 = vmatpush1.msra.mxu0 0.0
    %1383 = vmatprep.subr.mxu0 0.0
    %1384 = vmatpush1.msra.mxu0 0.0
    %1385 = vmatprep.subr.mxu0 0.0
    %1386 = vmatpush1.msra.mxu0 0.0
    %1387 = vmatprep.subr.mxu0 0.0
    %1388 = vmatpush1.msra.mxu0 0.0
    %1389 = vmatprep.subr.mxu0 0.0
    %1390 = vmatpush1.msra.mxu0 0.0
    %1391 = vmatprep.subr.mxu0 0.0
    %1392 = vmatpush1.msra.mxu0 0.0
    %1393 = vmatprep.subr.mxu0 0.0
    %1394 = vmatpush1.msra.mxu0 0.0
    %1395 = vmatprep.subr.mxu0 0.0
    %1396 = vmatpush1.msra.mxu0 0.0
    %1397 = vmatprep.subr.mxu0 0.0
    %1398 = vmatpush1.msra.mxu0 0.0
    %1399 = vmatprep.subr.mxu0 0.0
    %1400 = vmatpush1.msra.mxu0 0.0
    %1401 = vmatprep.subr.mxu0 0.0
    %1402 = vmatpush1.msra.mxu0 0.0
    %1403 = vmatprep.subr.mxu0 0.0
    %1404 = vmatpush1.msra.mxu0 0.0
    %1405 = vmatprep.subr.mxu0 0.0
    %1406 = vmatpush1.msra.mxu0 0.0
    %1407 = vmatprep.subr.mxu0 0.0
    %1408 = vmatpush1.msra.mxu0 0.0
    %1409 = vmatprep.mubr.f32.mxu0 0.0
    %1410 = vmatmul.mubr.f32.gmra.mrb[0].mxu0 %v1343
    %v1411 = vpop.f32.mrb[0].mxu0
    %v1412 = vadd.f32 %v821, %v1411
    %v1413 = vpop.f32.mrb[0].mxu0
    %1414 = vdwg.mxu0
    %1415 = vst.msk [vmem:[#allocation2] sm:$0xff] %vm101, %v901
    %1416 = vst.msk [vmem:[#allocation2 + $0x8] sm:$0xff] %vm101, %v974
    %1417 = vst.msk [vmem:[#allocation2 + $0x10] sm:$0xff] %vm101, %v1047
    %1418 = vst.msk [vmem:[#allocation2 + $0x18] sm:$0xff] %vm101, %v1120
    %1419 = vst.msk [vmem:[#allocation2 + $0x20] sm:$0xff] %vm101, %v1193
    %1420 = vst.msk [vmem:[#allocation2 + $0x28] sm:$0xff] %vm101, %v1266
    %1421 = vst.msk [vmem:[#allocation2 + $0x30] sm:$0xff] %vm101, %v1339
    %1422 = vst.msk [vmem:[#allocation2 + $0x38] sm:$0xff] %vm101, %v1412
    // Predicated region
    $region22: #{_forward_impl.1} parent=1 // pred_check
      _
    $region23: #{_forward_impl.1} parent=1 // pred_check_branch
      %1424 = sbr.rel (0) target = $region25
    $region24: #{_forward_impl.1} parent=1 // pred_region
      %s1426 = ssub.s32 1024, 1024
      %1427 = vsyncadd [#allocation3], %s1426
      %s1428 = sshll.u32 [#allocation2], 4
      %s1429 = int_to_ptr.vmem [resolvable:$true] %s1428
      %1434 = dma.vmem_to_hbm [thread:$0]  %s1429, 1024, %s5, [#allocation3], 128, 128, 8
    $region25: #{_forward_impl.1} parent=1 // pred_fallthru
      _
    // Predicated region
    $region26: #{_forward_impl.1} parent=1 // pred_check
      _
    $region27: #{_forward_impl.1} parent=1 // pred_check_branch
      %1436 = sbr.rel (0) target = $region29
    $region28: #{_forward_impl.1} parent=1 // pred_region
      %1437 = dma.done [#allocation3], 1024
    $region29: #{_forward_impl.1} parent=1 // pred_fallthru
      _
    %1438 = vsyncpa [#allocation3], 1

</llo_original>
